<compile_context>
chip_gen: v5e
topology: v5e:2x2
jax: 0.10.0
libtpu: 0.0.40
codegen_flags: <defaults>
</compile_context>

<pallas_src>
import numpy as np
import jax
import jax.numpy as jnp
from jax.experimental import pallas as pl
from jax.experimental.pallas import tpu as pltpu

# ---------------- static problem sizes (small, synthetic) -------------------
C, H, W = 4, 8, 8
D_IN = C * H * W            # 256
F_DIM = 128                 # feature width
K = 8                       # num classes

B_SRC = 4                   # labeled source batch
B_TRG = 4                   # labeled target batch
B_UL = 4                    # unlabeled target batch

N_LAB = B_SRC + B_TRG       # 8   rows of all_labeled_img
N_SRC_TOT = 2 * N_LAB       # 16  source_total (weak + strong labeled)
N_TGT = 2 * B_UL            # 8   target rows of data_combined (weak + strong)
N_ALL = N_SRC_TOT + N_TGT   # 24  data_combined rows


# ===================== fused FE + heads + loss kernel ========================
def _dst_fused_kernel(x_ref, wfe_ref, bfe_ref, wc12_ref, consts_ref, scal_ref,
                      loss_ref):
    # consts block layout: rows 0..7 = one-hot labels (lanes 0..7 used),
    #                      row  8    = merged classifier bias (16 lanes),
    #                      row  9    = srconly mask (lanes 0..7 used).
    onehot = consts_ref[0:N_LAB, :K]                       # [8, 8]
    bc12 = consts_ref[N_LAB:N_LAB + 1, :]                  # [1, 16]
    srconly = consts_ref[N_LAB + 1:N_LAB + 2, :K]          # [1, 8]

    tau = scal_ref[0]
    mu = scal_ref[1]
    fill = scal_ref[2]

    # ---- feature extractor + merged classifier heads (2 MXU pushes total) ---
    x = x_ref[...]                                                  # [24, 256]
    h = jnp.dot(x, wfe_ref[...], preferred_element_type=jnp.float32) + bfe_ref[...]
    h = jnp.maximum(h, 0.0)                                         # [24, 128]
    l12 = jnp.dot(h, wc12_ref[...], preferred_element_type=jnp.float32) + bc12
    l1 = l12[:, :K]                                                 # head 1 [24, 8]
    l2 = l12[:, K:2 * K]                                            # head 2 [24, 8]

    # ---- classifier-1 source loss: ONE log-softmax over all 16 rows ---------
    # lamb mixing elided: logits_source_pp == logits_source_p (BN-free FE).
    final_src = l1[:N_SRC_TOT]
    m1 = jnp.max(final_src, axis=1, keepdims=True)
    e1 = jnp.exp(final_src - m1)
    s1 = jnp.sum(e1, axis=1, keepdims=True)
    lsm1 = (final_src - m1) - jnp.log(s1)                           # log_softmax [16,K]

    ce1_w = -jnp.sum(onehot * lsm1[:N_LAB], axis=1, keepdims=True)  # weak rows
    ce1_s = -jnp.sum(onehot * lsm1[N_LAB:], axis=1, keepdims=True)  # strong rows
    loss1 = 0.5 * (jnp.mean(ce1_w, axis=0, keepdims=True) +
                   jnp.mean(ce1_s, axis=0, keepdims=True))          # [1,1]

    # confidence threshold c_tau, reusing e1/s1 of the weak source rows
    ps_src = e1[:N_LAB] * pl.reciprocal(s1[:N_LAB], approx=False)   # softmax(weak)
    c_tau = tau * jnp.mean(jnp.max(ps_src, axis=1, keepdims=True),
                           axis=0, keepdims=True)                   # [1,1]

    # ---- classifier-1 pseudo-labels from the weak unlabeled rows only -------
    lt_w = l1[N_SRC_TOT:N_SRC_TOT + B_UL]                           # [B_UL, K]
    et = jnp.exp(lt_w - jnp.max(lt_w, axis=1, keepdims=True))
    et = et * (1.0 - srconly)                     # zero source-only classes
    # softmax + L1 renorm folded into one normalization (denominators cancel)
    fp = et * pl.reciprocal(
        jnp.maximum(jnp.sum(et, axis=1, keepdims=True), 1e-12), approx=False)
    max_vals = jnp.max(fp, axis=1, keepdims=True)                   # [B_UL, 1]

    colu = jax.lax.broadcasted_iota(jnp.int32, (B_UL, K), 1)
    first_idx = jnp.min(jnp.where(fp >= max_vals, colu, K), axis=1, keepdims=True)
    pl_onehot = (colu == first_idx).astype(jnp.float32)             # first-argmax one-hot

    mask = jnp.where(max_vals >= c_tau, 1.0, fill)                  # [B_UL, 1]

    # ---- classifier-2 source loss: ONE log-softmax over all 16 rows ---------
    l2s = l2[:N_SRC_TOT]
    z2 = l2s - jnp.max(l2s, axis=1, keepdims=True)
    lsm2 = z2 - jnp.log(jnp.sum(jnp.exp(z2), axis=1, keepdims=True))
    ce2_w = -jnp.sum(onehot * lsm2[:N_LAB], axis=1, keepdims=True)
    ce2_s = -jnp.sum(onehot * lsm2[N_LAB:], axis=1, keepdims=True)
    loss2_src = 0.5 * (jnp.mean(ce2_w, axis=0, keepdims=True) +
                       jnp.mean(ce2_s, axis=0, keepdims=True))

    # ---- classifier-2 target loss on the strong unlabeled rows --------------
    l2t_s = l2[N_SRC_TOT + B_UL:]                                   # [B_UL, K]
    z2t = l2t_s - jnp.max(l2t_s, axis=1, keepdims=True)
    lsm2t = z2t - jnp.log(jnp.sum(jnp.exp(z2t), axis=1, keepdims=True))
    ce_t = -jnp.sum(pl_onehot * lsm2t, axis=1, keepdims=True)
    loss2_tgt = jnp.mean(ce_t * mask, axis=0, keepdims=True)

    loss2 = loss2_src + mu * loss2_tgt                              # [1,1]

    # ---- single (1,2) output: lane 0 = loss1, lane 1 = loss2 ----------------
    lane = jax.lax.broadcasted_iota(jnp.int32, (1, 2), 1)
    loss_ref[...] = jnp.where(lane == 0, loss1, loss2)


@jax.jit
def _dst_forward_jit(params, im_src, im_bar_src, im_trg, im_bar_trg,
                     im_trg_ul, im_bar_trg_ul, gt_src, gt_trg,
                     srconly, tau, fill, step, warm_steps):
    flat = lambda t: t.reshape(t.shape[0], -1).astype(jnp.float32)
    # data_combined = [all_labeled; all_labeled_bar; trg_ul; bar_trg_ul] (24 rows)
    x_all = jnp.concatenate([flat(im_src), flat(im_trg),
                             flat(im_bar_src), flat(im_bar_trg),
                             flat(im_trg_ul), flat(im_bar_trg_ul)], axis=0)

    labels = jnp.concatenate([gt_src, gt_trg]).astype(jnp.int32)       # [8]
    onehot = jax.nn.one_hot(labels, K, dtype=jnp.float32)              # [8, 8]

    # merged classifier heads
    wc12 = jnp.concatenate([params["wc1"], params["wc2"]], axis=1)     # [128, 16]
    bc12 = jnp.concatenate([params["bc1"], params["bc2"]], axis=1)     # [1, 16]

    # pack one-hot labels, merged bias and srconly into ONE consts block [10,16]
    onehot_p = jnp.pad(onehot, ((0, 0), (0, K)))
    srconly_p = jnp.pad(srconly.astype(jnp.float32), ((0, 0), (0, K)))
    consts = jnp.concatenate([onehot_p, bc12, srconly_p], axis=0)      # [10, 16]

    # mu computed on-device from traced step / warm_steps
    mu = 0.5 - jnp.cos(jnp.minimum(jnp.pi, jnp.pi * step / (warm_steps + 1e-5))) / 2.0
    scalars = jnp.stack([tau, mu, fill]).astype(jnp.float32)           # (3,) -> SMEM

    vmem = pl.BlockSpec(memory_space=pltpu.MemorySpace.VMEM)
    smem = pl.BlockSpec(memory_space=pltpu.MemorySpace.SMEM)
    losses = pl.pallas_call(
        _dst_fused_kernel,
        out_shape=jax.ShapeDtypeStruct((1, 2), jnp.float32),
        in_specs=[vmem, vmem, vmem, vmem, vmem, smem],
        out_specs=vmem,
    )(x_all, params["wfe"], params["bfe"], wc12, consts, scalars)
    return losses[0, 0], losses[0, 1]


# ============================== wrapper (glue) ===============================
def dst_loss_forward(params, hparams, im_src, im_bar_src, im_trg, im_bar_trg,
                     im_trg_ul, im_bar_trg_ul, gt_src, gt_trg, step, warm_steps,
                     src_class, trg_class, lamb_key):
    del lamb_key  # lamb mixing is an exact no-op for the BN-free FE (lpp == lp)
    # static (per-configuration) class-partition hyperparameters
    shared = [i for i in src_class if i in trg_class]
    src_only = [i for i in src_class if i not in trg_class]
    trg_only = [i for i in trg_class if i not in src_class]
    srconly_np = np.zeros((1, K), np.float32)
    srconly_np[0, src_only] = 1.0
    fill = np.float32(len(trg_only) / (len(trg_only) + len(shared)))

    return _dst_forward_jit(
        params, im_src, im_bar_src, im_trg, im_bar_trg,
        im_trg_ul, im_bar_trg_ul, gt_src, gt_trg,
        jnp.asarray(srconly_np),
        jnp.asarray(hparams["tau"], dtype=jnp.float32),
        jnp.asarray(fill, dtype=jnp.float32),
        jnp.asarray(step, dtype=jnp.float32),
        jnp.asarray(warm_steps, dtype=jnp.float32))


# ======================= pure-JAX reference (for check) ======================
def dst_loss_reference(params, hparams, im_src, im_bar_src, im_trg, im_bar_trg,
                       im_trg_ul, im_bar_trg_ul, gt_src, gt_trg, step,
                       warm_steps, src_class, trg_class, lamb_key):
    all_labeled = jnp.concatenate([im_src, im_trg], 0)
    all_labeled_bar = jnp.concatenate([im_bar_src, im_bar_trg], 0)
    labels = jnp.concatenate([gt_src, gt_trg], 0)
    data_combined = jnp.concatenate([all_labeled, all_labeled_bar,
                                     im_trg_ul, im_bar_trg_ul], 0)
    source_combined = jnp.concatenate([all_labeled, all_labeled_bar], 0)
    x_all = data_combined.reshape(data_combined.shape[0], -1).astype(jnp.float32)
    x_src = source_combined.reshape(source_combined.shape[0], -1).astype(jnp.float32)

    def fe_cls(x):
        h = jnp.maximum(x @ params["wfe"] + params["bfe"], 0.0)
        return h @ params["wc1"] + params["bc1"], h @ params["wc2"] + params["bc2"]

    l1_all, l2_all = fe_cls(x_all)
    l1_pp, _ = fe_cls(x_src)            # reference keeps the second forward pass
    st = x_src.shape[0]
    lp, ltgt = l1_all[:st], l1_all[st:]
    l2s, l2t = l2_all[:st], l2_all[st:]

    lamb = jax.random.uniform(lamb_key, lp.shape, dtype=jnp.float32)
    final = lamb * lp + (1.0 - lamb) * l1_pp
    weak, strong = final[:N_LAB], final[N_LAB:]

    def ce(logits, lab):
        lsm = jax.nn.log_softmax(logits, axis=1)
        return -jnp.mean(lsm[jnp.arange(logits.shape[0]), lab])

    loss1 = 0.5 * (ce(weak, labels) + ce(strong, labels))

    ps_src = jax.nn.softmax(weak, axis=1)
    c_tau = hparams["tau"] * jnp.mean(jnp.max(ps_src, axis=1))
    ps_tgt = jax.nn.softmax(ltgt, axis=1)
    shared = [i for i in src_class if i in trg_class]
    src_only = [i for i in src_class if i not in trg_class]
    trg_only = [i for i in trg_class if i not in src_class]
    fp = ps_tgt[:B_UL]
    fp = fp.at[:, np.array(src_only)].set(0.0)
    fp = fp / jnp.maximum(jnp.sum(fp, axis=1, keepdims=True), 1e-12)
    max_vals = jnp.max(fp, axis=1)
    pseudo = jnp.argmax(fp, axis=1)
    fill = len(trg_only) / (len(trg_only) + len(shared))
    mask = jnp.where(max_vals >= c_tau, 1.0, fill)

    loss2_src = 0.5 * (ce(l2s[:N_LAB], labels) + ce(l2s[N_LAB:], labels))
    lsm2 = jax.nn.log_softmax(l2t[B_UL:], axis=1)
    ce_rows = -lsm2[jnp.arange(B_UL), pseudo]
    loss2_tgt = jnp.mean(ce_rows * mask)
    mu = 0.5 - jnp.cos(jnp.minimum(jnp.pi, jnp.pi * step / (warm_steps + 1e-5))) / 2.0
    return loss1, loss2_src + mu * loss2_tgt


# ==================================== main ===================================
if __name__ == "__main__":
    key = jax.random.PRNGKey(0)
    (k_img, k_wfe, k_wc1, k_wc2, k_lab_s, k_lab_t, k_lamb) = jax.random.split(key, 7)

    # deterministic synthetic parameters (linear FE + two classifier heads)
    params = {
        "wfe": jax.random.normal(k_wfe, (D_IN, F_DIM), jnp.float32) * 0.05,
        "bfe": jnp.zeros((1, F_DIM), jnp.float32),
        "wc1": jax.random.normal(k_wc1, (F_DIM, K), jnp.float32) * 0.1,
        "bc1": jnp.zeros((1, K), jnp.float32),
        "wc2": jax.random.normal(k_wc2, (F_DIM, K), jnp.float32) * 0.1,
        "bc2": jnp.zeros((1, K), jnp.float32),
    }

    imgs = jax.random.normal(k_img, (6, B_SRC, C, H, W), jnp.float32)
    im_src, im_bar_src, im_trg, im_bar_trg, im_trg_ul, im_bar_trg_ul = [imgs[i] for i in range(6)]
    gt_src = jax.random.randint(k_lab_s, (B_SRC,), 0, K, dtype=jnp.int32)
    gt_trg = jax.random.randint(k_lab_t, (B_TRG,), 0, K, dtype=jnp.int32)

    hparams = {"tau": 0.9}
    step, warm_steps = 3.0, 10.0
    src_class = [0, 1, 2, 3, 4, 5]
    trg_class = [3, 4, 5, 6, 7]

    loss1, loss2 = dst_loss_forward(params, hparams, im_src, im_bar_src, im_trg,
                                    im_bar_trg, im_trg_ul, im_bar_trg_ul,
                                    gt_src, gt_trg, step, warm_steps,
                                    src_class, trg_class, k_lamb)
    jax.block_until_ready((loss1, loss2))

    ref1, ref2 = dst_loss_reference(params, hparams, im_src, im_bar_src, im_trg,
                                    im_bar_trg, im_trg_ul, im_bar_trg_ul,
                                    gt_src, gt_trg, step, warm_steps,
                                    src_class, trg_class, k_lamb)
    np.testing.assert_allclose(np.asarray(loss1), np.asarray(ref1), rtol=1e-4, atol=1e-4)
    np.testing.assert_allclose(np.asarray(loss2), np.asarray(ref2), rtol=1e-4, atol=1e-4)

    print("KERNEL_OK")
</pallas_src>

<mosaic_0001>
module attributes {stable_mosaic.version = 11 : i64} {
  func.func @_dst_fused_kernel(%arg0: memref<24x256xf32, #tpu.memory_space<vmem>>, %arg1: memref<256x128xf32, #tpu.memory_space<vmem>>, %arg2: memref<1x128xf32, #tpu.memory_space<vmem>>, %arg3: memref<128x16xf32, #tpu.memory_space<vmem>>, %arg4: memref<10x16xf32, #tpu.memory_space<vmem>>, %arg5: memref<3xf32, #tpu.memory_space<smem>>, %arg6: memref<1x2xf32, #tpu.memory_space<vmem>>) attributes {dimension_semantics = [], scalar_prefetch = 0 : i64, scratch_operands = 0 : i64, tpu.core_type = #tpu.core_type<tc>} {
    %c0 = arith.constant 0 : index
    %c0_0 = arith.constant 0 : index
    %0 = vector.load %arg4[%c0, %c0_0] : memref<10x16xf32, #tpu.memory_space<vmem>>, vector<8x8xf32>
    %c8 = arith.constant 8 : index
    %c0_1 = arith.constant 0 : index
    %1 = vector.load %arg4[%c8, %c0_1] : memref<10x16xf32, #tpu.memory_space<vmem>>, vector<1x16xf32>
    %c9 = arith.constant 9 : index
    %c0_2 = arith.constant 0 : index
    %2 = vector.load %arg4[%c9, %c0_2] : memref<10x16xf32, #tpu.memory_space<vmem>>, vector<1x8xf32>
    %c0_3 = arith.constant 0 : index
    %3 = memref.load %arg5[%c0_3] : memref<3xf32, #tpu.memory_space<smem>>
    %c1 = arith.constant 1 : index
    %4 = memref.load %arg5[%c1] : memref<3xf32, #tpu.memory_space<smem>>
    %c2 = arith.constant 2 : index
    %5 = memref.load %arg5[%c2] : memref<3xf32, #tpu.memory_space<smem>>
    %c0_4 = arith.constant 0 : index
    %c0_5 = arith.constant 0 : index
    %6 = vector.load %arg0[%c0_4, %c0_5] : memref<24x256xf32, #tpu.memory_space<vmem>>, vector<24x256xf32>
    %c0_6 = arith.constant 0 : index
    %c0_7 = arith.constant 0 : index
    %7 = vector.load %arg1[%c0_6, %c0_7] : memref<256x128xf32, #tpu.memory_space<vmem>>, vector<256x128xf32>
    %cst = arith.constant dense<0.000000e+00> : vector<24x128xf32>
    %8 = tpu.matmul %6, %7, %cst {dimension_numbers = #tpu.dot_dimension_numbers<[1], [0], [0], [1], [0, 0, 1, 1], [], []>} : vector<24x256xf32>, vector<256x128xf32>, vector<24x128xf32> -> vector<24x128xf32>
    %c0_8 = arith.constant 0 : index
    %c0_9 = arith.constant 0 : index
    %9 = vector.load %arg2[%c0_8, %c0_9] : memref<1x128xf32, #tpu.memory_space<vmem>>, vector<1x128xf32>
    %10 = vector.broadcast %9 : vector<1x128xf32> to vector<24x128xf32>
    %11 = arith.addf %8, %10 : vector<24x128xf32>
    %cst_10 = arith.constant 0.000000e+00 : f32
    %12 = vector.broadcast %cst_10 : f32 to vector<24x128xf32>
    %13 = arith.maximumf %11, %12 : vector<24x128xf32>
    %c0_11 = arith.constant 0 : index
    %c0_12 = arith.constant 0 : index
    %14 = vector.load %arg3[%c0_11, %c0_12] : memref<128x16xf32, #tpu.memory_space<vmem>>, vector<128x16xf32>
    %cst_13 = arith.constant dense<0.000000e+00> : vector<24x16xf32>
    %15 = tpu.matmul %13, %14, %cst_13 {dimension_numbers = #tpu.dot_dimension_numbers<[1], [0], [0], [1], [0, 0, 1, 1], [], []>} : vector<24x128xf32>, vector<128x16xf32>, vector<24x16xf32> -> vector<24x16xf32>
    %16 = vector.broadcast %1 : vector<1x16xf32> to vector<24x16xf32>
    %17 = arith.addf %15, %16 : vector<24x16xf32>
    %18 = vector.extract_strided_slice %17 {offsets = [0, 0], sizes = [24, 8], strides = [1, 1]} : vector<24x16xf32> to vector<24x8xf32>
    %19 = vector.extract_strided_slice %17 {offsets = [0, 8], sizes = [24, 8], strides = [1, 1]} : vector<24x16xf32> to vector<24x8xf32>
    %20 = vector.extract_strided_slice %18 {offsets = [0, 0], sizes = [16, 8], strides = [1, 1]} : vector<24x8xf32> to vector<16x8xf32>
    %cst_14 = arith.constant dense<0xFF800000> : vector<16xf32>
    %21 = vector.multi_reduction <maximumf>, %20, %cst_14 [1] : vector<16x8xf32> to vector<16xf32>
    %22 = vector.shape_cast %21 : vector<16xf32> to vector<16x1xf32>
    %23 = vector.broadcast %22 : vector<16x1xf32> to vector<16x8xf32>
    %24 = arith.subf %20, %23 : vector<16x8xf32>
    %25 = math.exp %24 : vector<16x8xf32>
    %cst_15 = arith.constant dense<0.000000e+00> : vector<16xf32>
    %26 = vector.multi_reduction <add>, %25, %cst_15 [1] : vector<16x8xf32> to vector<16xf32>
    %27 = vector.shape_cast %26 : vector<16xf32> to vector<16x1xf32>
    %28 = vector.broadcast %22 : vector<16x1xf32> to vector<16x8xf32>
    %29 = arith.subf %20, %28 : vector<16x8xf32>
    %30 = math.log %27 : vector<16x1xf32>
    %31 = vector.broadcast %30 : vector<16x1xf32> to vector<16x8xf32>
    %32 = arith.subf %29, %31 : vector<16x8xf32>
    %33 = vector.extract_strided_slice %32 {offsets = [0, 0], sizes = [8, 8], strides = [1, 1]} : vector<16x8xf32> to vector<8x8xf32>
    %34 = arith.mulf %0, %33 : vector<8x8xf32>
    %cst_16 = arith.constant dense<0.000000e+00> : vector<8xf32>
    %35 = vector.multi_reduction <add>, %34, %cst_16 [1] : vector<8x8xf32> to vector<8xf32>
    %36 = vector.shape_cast %35 : vector<8xf32> to vector<8x1xf32>
    %cst_17 = arith.constant 0.000000e+00 : f32
    %37 = vector.broadcast %cst_17 : f32 to vector<8x1xf32>
    %38 = arith.subf %37, %36 : vector<8x1xf32>
    %39 = vector.extract_strided_slice %32 {offsets = [8, 0], sizes = [8, 8], strides = [1, 1]} : vector<16x8xf32> to vector<8x8xf32>
    %40 = arith.mulf %0, %39 : vector<8x8xf32>
    %cst_18 = arith.constant dense<0.000000e+00> : vector<8xf32>
    %41 = vector.multi_reduction <add>, %40, %cst_18 [1] : vector<8x8xf32> to vector<8xf32>
    %42 = vector.shape_cast %41 : vector<8xf32> to vector<8x1xf32>
    %cst_19 = arith.constant 0.000000e+00 : f32
    %43 = vector.broadcast %cst_19 : f32 to vector<8x1xf32>
    %44 = arith.subf %43, %42 : vector<8x1xf32>
    %cst_20 = arith.constant dense<0.000000e+00> : vector<1xf32>
    %45 = vector.multi_reduction <add>, %38, %cst_20 [0] : vector<8x1xf32> to vector<1xf32>
    %46 = vector.shape_cast %45 : vector<1xf32> to vector<1x1xf32>
    %cst_21 = arith.constant 8.000000e+00 : f32
    %47 = vector.broadcast %cst_21 : f32 to vector<1x1xf32>
    %48 = arith.divf %46, %47 : vector<1x1xf32>
    %cst_22 = arith.constant dense<0.000000e+00> : vector<1xf32>
    %49 = vector.multi_reduction <add>, %44, %cst_22 [0] : vector<8x1xf32> to vector<1xf32>
    %50 = vector.shape_cast %49 : vector<1xf32> to vector<1x1xf32>
    %cst_23 = arith.constant 8.000000e+00 : f32
    %51 = vector.broadcast %cst_23 : f32 to vector<1x1xf32>
    %52 = arith.divf %50, %51 : vector<1x1xf32>
    %53 = arith.addf %48, %52 : vector<1x1xf32>
    %cst_24 = arith.constant 5.000000e-01 : f32
    %54 = vector.broadcast %cst_24 : f32 to vector<1x1xf32>
    %55 = arith.mulf %54, %53 : vector<1x1xf32>
    %56 = vector.extract_strided_slice %25 {offsets = [0, 0], sizes = [8, 8], strides = [1, 1]} : vector<16x8xf32> to vector<8x8xf32>
    %57 = vector.extract_strided_slice %27 {offsets = [0, 0], sizes = [8, 1], strides = [1, 1]} : vector<16x1xf32> to vector<8x1xf32>
    %58 = tpu.reciprocal %57 : vector<8x1xf32> -> vector<8x1xf32>
    %59 = vector.broadcast %58 : vector<8x1xf32> to vector<8x8xf32>
    %60 = arith.mulf %56, %59 : vector<8x8xf32>
    %cst_25 = arith.constant dense<0xFF800000> : vector<8xf32>
    %61 = vector.multi_reduction <maximumf>, %60, %cst_25 [1] : vector<8x8xf32> to vector<8xf32>
    %62 = vector.shape_cast %61 : vector<8xf32> to vector<8x1xf32>
    %cst_26 = arith.constant dense<0.000000e+00> : vector<1xf32>
    %63 = vector.multi_reduction <add>, %62, %cst_26 [0] : vector<8x1xf32> to vector<1xf32>
    %64 = vector.shape_cast %63 : vector<1xf32> to vector<1x1xf32>
    %cst_27 = arith.constant 8.000000e+00 : f32
    %65 = vector.broadcast %cst_27 : f32 to vector<1x1xf32>
    %66 = arith.divf %64, %65 : vector<1x1xf32>
    %67 = vector.broadcast %3 : f32 to vector<1x1xf32>
    %68 = arith.mulf %67, %66 : vector<1x1xf32>
    %69 = vector.extract_strided_slice %18 {offsets = [16, 0], sizes = [4, 8], strides = [1, 1]} : vector<24x8xf32> to vector<4x8xf32>
    %cst_28 = arith.constant dense<0xFF800000> : vector<4xf32>
    %70 = vector.multi_reduction <maximumf>, %69, %cst_28 [1] : vector<4x8xf32> to vector<4xf32>
    %71 = vector.shape_cast %70 : vector<4xf32> to vector<4x1xf32>
    %72 = vector.broadcast %71 : vector<4x1xf32> to vector<4x8xf32>
    %73 = arith.subf %69, %72 : vector<4x8xf32>
    %74 = math.exp %73 : vector<4x8xf32>
    %cst_29 = arith.constant 1.000000e+00 : f32
    %75 = vector.broadcast %cst_29 : f32 to vector<1x8xf32>
    %76 = arith.subf %75, %2 : vector<1x8xf32>
    %77 = vector.broadcast %76 : vector<1x8xf32> to vector<4x8xf32>
    %78 = arith.mulf %74, %77 : vector<4x8xf32>
    %cst_30 = arith.constant dense<0.000000e+00> : vector<4xf32>
    %79 = vector.multi_reduction <add>, %78, %cst_30 [1] : vector<4x8xf32> to vector<4xf32>
    %80 = vector.shape_cast %79 : vector<4xf32> to vector<4x1xf32>
    %cst_31 = arith.constant 9.99999996E-13 : f32
    %81 = vector.broadcast %cst_31 : f32 to vector<4x1xf32>
    %82 = arith.maximumf %80, %81 : vector<4x1xf32>
    %83 = tpu.reciprocal %82 : vector<4x1xf32> -> vector<4x1xf32>
    %84 = vector.broadcast %83 : vector<4x1xf32> to vector<4x8xf32>
    %85 = arith.mulf %78, %84 : vector<4x8xf32>
    %cst_32 = arith.constant dense<0xFF800000> : vector<4xf32>
    %86 = vector.multi_reduction <maximumf>, %85, %cst_32 [1] : vector<4x8xf32> to vector<4xf32>
    %87 = vector.shape_cast %86 : vector<4xf32> to vector<4x1xf32>
    %88 = tpu.iota {dimensions = array<i32: 1>} : vector<4x8xi32>
    %89 = vector.broadcast %87 : vector<4x1xf32> to vector<4x8xf32>
    %90 = arith.cmpf oge, %85, %89 : vector<4x8xf32>
    %c8_i32 = arith.constant 8 : i32
    %91 = vector.broadcast %c8_i32 : i32 to vector<4x8xi32>
    %92 = arith.select %90, %88, %91 : vector<4x8xi1>, vector<4x8xi32>
    %cst_33 = arith.constant dense<2147483647> : vector<4xi32>
    %93 = vector.multi_reduction <minsi>, %92, %cst_33 [1] : vector<4x8xi32> to vector<4xi32>
    %94 = vector.shape_cast %93 : vector<4xi32> to vector<4x1xi32>
    %95 = vector.broadcast %94 : vector<4x1xi32> to vector<4x8xi32>
    %96 = arith.cmpi eq, %88, %95 : vector<4x8xi32>
    %97 = arith.extui %96 : vector<4x8xi1> to vector<4x8xi32>
    %98 = arith.sitofp %97 : vector<4x8xi32> to vector<4x8xf32>
    %99 = vector.broadcast %68 : vector<1x1xf32> to vector<4x1xf32>
    %100 = arith.cmpf oge, %87, %99 : vector<4x1xf32>
    %cst_34 = arith.constant 1.000000e+00 : f32
    %101 = vector.broadcast %cst_34 : f32 to vector<4x1xf32>
    %102 = vector.broadcast %5 : f32 to vector<4x1xf32>
    %103 = arith.select %100, %101, %102 : vector<4x1xi1>, vector<4x1xf32>
    %104 = vector.extract_strided_slice %19 {offsets = [0, 0], sizes = [16, 8], strides = [1, 1]} : vector<24x8xf32> to vector<16x8xf32>
    %cst_35 = arith.constant dense<0xFF800000> : vector<16xf32>
    %105 = vector.multi_reduction <maximumf>, %104, %cst_35 [1] : vector<16x8xf32> to vector<16xf32>
    %106 = vector.shape_cast %105 : vector<16xf32> to vector<16x1xf32>
    %107 = vector.broadcast %106 : vector<16x1xf32> to vector<16x8xf32>
    %108 = arith.subf %104, %107 : vector<16x8xf32>
    %109 = math.exp %108 : vector<16x8xf32>
    %cst_36 = arith.constant dense<0.000000e+00> : vector<16xf32>
    %110 = vector.multi_reduction <add>, %109, %cst_36 [1] : vector<16x8xf32> to vector<16xf32>
    %111 = vector.shape_cast %110 : vector<16xf32> to vector<16x1xf32>
    %112 = math.log %111 : vector<16x1xf32>
    %113 = vector.broadcast %112 : vector<16x1xf32> to vector<16x8xf32>
    %114 = arith.subf %108, %113 : vector<16x8xf32>
    %115 = vector.extract_strided_slice %114 {offsets = [0, 0], sizes = [8, 8], strides = [1, 1]} : vector<16x8xf32> to vector<8x8xf32>
    %116 = arith.mulf %0, %115 : vector<8x8xf32>
    %cst_37 = arith.constant dense<0.000000e+00> : vector<8xf32>
    %117 = vector.multi_reduction <add>, %116, %cst_37 [1] : vector<8x8xf32> to vector<8xf32>
    %118 = vector.shape_cast %117 : vector<8xf32> to vector<8x1xf32>
    %cst_38 = arith.constant 0.000000e+00 : f32
    %119 = vector.broadcast %cst_38 : f32 to vector<8x1xf32>
    %120 = arith.subf %119, %118 : vector<8x1xf32>
    %121 = vector.extract_strided_slice %114 {offsets = [8, 0], sizes = [8, 8], strides = [1, 1]} : vector<16x8xf32> to vector<8x8xf32>
    %122 = arith.mulf %0, %121 : vector<8x8xf32>
    %cst_39 = arith.constant dense<0.000000e+00> : vector<8xf32>
    %123 = vector.multi_reduction <add>, %122, %cst_39 [1] : vector<8x8xf32> to vector<8xf32>
    %124 = vector.shape_cast %123 : vector<8xf32> to vector<8x1xf32>
    %cst_40 = arith.constant 0.000000e+00 : f32
    %125 = vector.broadcast %cst_40 : f32 to vector<8x1xf32>
    %126 = arith.subf %125, %124 : vector<8x1xf32>
    %cst_41 = arith.constant dense<0.000000e+00> : vector<1xf32>
    %127 = vector.multi_reduction <add>, %120, %cst_41 [0] : vector<8x1xf32> to vector<1xf32>
    %128 = vector.shape_cast %127 : vector<1xf32> to vector<1x1xf32>
    %cst_42 = arith.constant 8.000000e+00 : f32
    %129 = vector.broadcast %cst_42 : f32 to vector<1x1xf32>
    %130 = arith.divf %128, %129 : vector<1x1xf32>
    %cst_43 = arith.constant dense<0.000000e+00> : vector<1xf32>
    %131 = vector.multi_reduction <add>, %126, %cst_43 [0] : vector<8x1xf32> to vector<1xf32>
    %132 = vector.shape_cast %131 : vector<1xf32> to vector<1x1xf32>
    %cst_44 = arith.constant 8.000000e+00 : f32
    %133 = vector.broadcast %cst_44 : f32 to vector<1x1xf32>
    %134 = arith.divf %132, %133 : vector<1x1xf32>
    %135 = arith.addf %130, %134 : vector<1x1xf32>
    %cst_45 = arith.constant 5.000000e-01 : f32
    %136 = vector.broadcast %cst_45 : f32 to vector<1x1xf32>
    %137 = arith.mulf %136, %135 : vector<1x1xf32>
    %138 = vector.extract_strided_slice %19 {offsets = [20, 0], sizes = [4, 8], strides = [1, 1]} : vector<24x8xf32> to vector<4x8xf32>
    %cst_46 = arith.constant dense<0xFF800000> : vector<4xf32>
    %139 = vector.multi_reduction <maximumf>, %138, %cst_46 [1] : vector<4x8xf32> to vector<4xf32>
    %140 = vector.shape_cast %139 : vector<4xf32> to vector<4x1xf32>
    %141 = vector.broadcast %140 : vector<4x1xf32> to vector<4x8xf32>
    %142 = arith.subf %138, %141 : vector<4x8xf32>
    %143 = math.exp %142 : vector<4x8xf32>
    %cst_47 = arith.constant dense<0.000000e+00> : vector<4xf32>
    %144 = vector.multi_reduction <add>, %143, %cst_47 [1] : vector<4x8xf32> to vector<4xf32>
    %145 = vector.shape_cast %144 : vector<4xf32> to vector<4x1xf32>
    %146 = math.log %145 : vector<4x1xf32>
    %147 = vector.broadcast %146 : vector<4x1xf32> to vector<4x8xf32>
    %148 = arith.subf %142, %147 : vector<4x8xf32>
    %149 = arith.mulf %98, %148 : vector<4x8xf32>
    %cst_48 = arith.constant dense<0.000000e+00> : vector<4xf32>
    %150 = vector.multi_reduction <add>, %149, %cst_48 [1] : vector<4x8xf32> to vector<4xf32>
    %151 = vector.shape_cast %150 : vector<4xf32> to vector<4x1xf32>
    %cst_49 = arith.constant 0.000000e+00 : f32
    %152 = vector.broadcast %cst_49 : f32 to vector<4x1xf32>
    %153 = arith.subf %152, %151 : vector<4x1xf32>
    %154 = arith.mulf %153, %103 : vector<4x1xf32>
    %cst_50 = arith.constant dense<0.000000e+00> : vector<1xf32>
    %155 = vector.multi_reduction <add>, %154, %cst_50 [0] : vector<4x1xf32> to vector<1xf32>
    %156 = vector.shape_cast %155 : vector<1xf32> to vector<1x1xf32>
    %cst_51 = arith.constant 4.000000e+00 : f32
    %157 = vector.broadcast %cst_51 : f32 to vector<1x1xf32>
    %158 = arith.divf %156, %157 : vector<1x1xf32>
    %159 = vector.broadcast %4 : f32 to vector<1x1xf32>
    %160 = arith.mulf %159, %158 : vector<1x1xf32>
    %161 = arith.addf %137, %160 : vector<1x1xf32>
    %162 = tpu.iota {dimensions = array<i32: 1>} : vector<1x2xi32>
    %c0_i32 = arith.constant 0 : i32
    %163 = vector.broadcast %c0_i32 : i32 to vector<1x2xi32>
    %164 = arith.cmpi eq, %162, %163 : vector<1x2xi32>
    %165 = vector.shape_cast %55 : vector<1x1xf32> to vector<1x1xf32>
    %166 = vector.broadcast %165 : vector<1x1xf32> to vector<1x2xf32>
    %167 = vector.shape_cast %161 : vector<1x1xf32> to vector<1x1xf32>
    %168 = vector.broadcast %167 : vector<1x1xf32> to vector<1x2xf32>
    %169 = arith.select %164, %166, %168 : vector<1x2xi1>, vector<1x2xf32>
    %c0_52 = arith.constant 0 : index
    %c0_53 = arith.constant 0 : index
    %170 = vector.load %arg6[%c0_52, %c0_53] : memref<1x2xf32, #tpu.memory_space<vmem>>, vector<1x2xf32>
    tpu.vector_store %arg6[%c0_52, %c0_53], %169 {strides = array<i32>} : memref<1x2xf32, #tpu.memory_space<vmem>>, vector<1x2xf32>,
    return
  }
}

</mosaic_0001>

<llo_original>
// kernel: _dst_forward_jit.1
$region0: #{_dst_forward_jit.1}
  #allocation0 [shape = 'u32[]', space=smem, size = 0x4, offset = 0x4, fixed_abs, tag = 'smem constant byte address 0x4 - core index']
  #allocation1 [shape = 'u32[72,128]{1,0:T(1,128)}', space=vmem, size = 0x9000, scoped, tag = 'internal scratch']
  %s0 = inlined_call_operand.vmem [shape: f32[24,256], index: 0, kind: input, shape index: {}]
  %s1 = inlined_call_operand.vmem [shape: f32[256,128], index: 1, kind: input, shape index: {}]
  %s2 = inlined_call_operand.vmem [shape: f32[1,128], index: 2, kind: input, shape index: {}]
  %s3 = inlined_call_operand.vmem [shape: f32[128,16], index: 3, kind: input, shape index: {}]
  %s4 = inlined_call_operand.vmem [shape: f32[10,16], index: 4, kind: input, shape index: {}]
  %s5 = inlined_call_operand.vmem [shape: f32[3], index: 5, kind: input, shape index: {}]
  %s6 = inlined_call_operand.vmem [shape: f32[1,2], index: 6, kind: output, shape index: {}]
  %s7 = sld [smem:[#allocation0]]
  $region38: #{_dst_forward_jit.1} parent=0
    _
  %s9 = ssub.s32 1, %s7
  %s10 = scalar_select 0, %s9, %s7
  $region1: #{_dst_forward_jit.1} parent=0
    #allocation2 [shape = 'u8[512]{0}', space=smem, size = 0x200, scoped, tag = 'input window, operand 5, single buffered']
    #allocation3 [shape = 's32[1]{0}', space=sflag, size = 0x4, scoped, tag = 'scoped memory for _dst_forward_jit.1']
    %11 = vsyncpa [#allocation3], 0
    // Predicated region
    $region2: #{_dst_forward_jit.1} parent=1 // pred_check
      _
    $region3: #{_dst_forward_jit.1} parent=1 // pred_check_branch
      %13 = sbr.rel (0) target = $region5
    $region4: #{_dst_forward_jit.1} parent=1 // pred_region
      _
    $region5: #{_dst_forward_jit.1} parent=1 // pred_fallthru
      _
    // Predicated region
    $region6: #{_dst_forward_jit.1} parent=1 // pred_check
      _
    $region7: #{_dst_forward_jit.1} parent=1 // pred_check_branch
      %15 = sbr.rel (0) target = $region9
    $region8: #{_dst_forward_jit.1} parent=1 // pred_region
      _
    $region9: #{_dst_forward_jit.1} parent=1 // pred_fallthru
      _
    // Predicated region
    $region10: #{_dst_forward_jit.1} parent=1 // pred_check
      _
    $region11: #{_dst_forward_jit.1} parent=1 // pred_check_branch
      %17 = sbr.rel (0) target = $region13
    $region12: #{_dst_forward_jit.1} parent=1 // pred_region
      _
    $region13: #{_dst_forward_jit.1} parent=1 // pred_fallthru
      _
    // Predicated region
    $region14: #{_dst_forward_jit.1} parent=1 // pred_check
      _
    $region15: #{_dst_forward_jit.1} parent=1 // pred_check_branch
      %19 = sbr.rel (0) target = $region17
    $region16: #{_dst_forward_jit.1} parent=1 // pred_region
      _
    $region17: #{_dst_forward_jit.1} parent=1 // pred_fallthru
      _
    // Predicated region
    $region18: #{_dst_forward_jit.1} parent=1 // pred_check
      _
    $region19: #{_dst_forward_jit.1} parent=1 // pred_check_branch
      %21 = sbr.rel (0) target = $region21
    $region20: #{_dst_forward_jit.1} parent=1 // pred_region
      _
    $region21: #{_dst_forward_jit.1} parent=1 // pred_fallthru
      _
    // Predicated region
    $region22: #{_dst_forward_jit.1} parent=1 // pred_check
      _
    $region23: #{_dst_forward_jit.1} parent=1 // pred_check_branch
      %23 = sbr.rel (0) target = $region25
    $region24: #{_dst_forward_jit.1} parent=1 // pred_region
      %25 = vsyncadd [#allocation3], 0
      %s27 = sshll.u32 %s5, 4
      %s28 = int_to_ptr.vmem [resolvable:$true] %s27
      %30 = dma.vmem_to_smem %s28, 16, [#allocation2], [#allocation3]
    $region25: #{_dst_forward_jit.1} parent=1 // pred_fallthru
      _
    // Predicated region
    $region26: #{_dst_forward_jit.1} parent=1 // pred_check
      _
    $region27: #{_dst_forward_jit.1} parent=1 // pred_check_branch
      %32 = sbr.rel (0) target = $region29
    $region28: #{_dst_forward_jit.1} parent=1 // pred_region
      %34 = dma.done [#allocation3], 16
    $region29: #{_dst_forward_jit.1} parent=1 // pred_fallthru
      _
    %35 = sfence
    %v36 = vld [vmem:[%s4] sm:$0xff]
    %v37 = vld [vmem:[%s4 + $0x8] sm:$0x1]
    %v38 = vld [vmem:[%s4 + $0x9] sm:$0x1]
    %s39 = sld [smem:[#allocation2]]
    %s40 = sld [smem:[#allocation2 + $0x1]]
    %s41 = sld [smem:[#allocation2 + $0x2]]
    %v42 = vld [vmem:[%s0] sm:$0xff]
    %v43 = vld [vmem:[%s0 + $0x8] sm:$0xff]
    %v44 = vld [vmem:[%s0 + $0x10] sm:$0xff]
    %v45 = vld [vmem:[%s0 + $0x18] sm:$0xff]
    %v46 = vld [vmem:[%s0 + $0x20] sm:$0xff]
    %v47 = vld [vmem:[%s0 + $0x28] sm:$0xff]
    %v48 = vld [vmem:[%s1] sm:$0xff]
    %v49 = vld [vmem:[%s1 + $0x8] sm:$0xff]
    %v50 = vld [vmem:[%s1 + $0x10] sm:$0xff]
    %v51 = vld [vmem:[%s1 + $0x18] sm:$0xff]
    %v52 = vld [vmem:[%s1 + $0x20] sm:$0xff]
    %v53 = vld [vmem:[%s1 + $0x28] sm:$0xff]
    %v54 = vld [vmem:[%s1 + $0x30] sm:$0xff]
    %v55 = vld [vmem:[%s1 + $0x38] sm:$0xff]
    %v56 = vld [vmem:[%s1 + $0x40] sm:$0xff]
    %v57 = vld [vmem:[%s1 + $0x48] sm:$0xff]
    %v58 = vld [vmem:[%s1 + $0x50] sm:$0xff]
    %v59 = vld [vmem:[%s1 + $0x58] sm:$0xff]
    %v60 = vld [vmem:[%s1 + $0x60] sm:$0xff]
    %v61 = vld [vmem:[%s1 + $0x68] sm:$0xff]
    %v62 = vld [vmem:[%s1 + $0x70] sm:$0xff]
    %v63 = vld [vmem:[%s1 + $0x78] sm:$0xff]
    %v64 = vld [vmem:[%s1 + $0x80] sm:$0xff]
    %v65 = vld [vmem:[%s1 + $0x88] sm:$0xff]
    %v66 = vld [vmem:[%s1 + $0x90] sm:$0xff]
    %v67 = vld [vmem:[%s1 + $0x98] sm:$0xff]
    %v68 = vld [vmem:[%s1 + $0xa0] sm:$0xff]
    %v69 = vld [vmem:[%s1 + $0xa8] sm:$0xff]
    %v70 = vld [vmem:[%s1 + $0xb0] sm:$0xff]
    %v71 = vld [vmem:[%s1 + $0xb8] sm:$0xff]
    %v72 = vld [vmem:[%s1 + $0xc0] sm:$0xff]
    %v73 = vld [vmem:[%s1 + $0xc8] sm:$0xff]
    %v74 = vld [vmem:[%s1 + $0xd0] sm:$0xff]
    %v75 = vld [vmem:[%s1 + $0xd8] sm:$0xff]
    %v76 = vld [vmem:[%s1 + $0xe0] sm:$0xff]
    %v77 = vld [vmem:[%s1 + $0xe8] sm:$0xff]
    %v78 = vld [vmem:[%s1 + $0xf0] sm:$0xff]
    %v79 = vld [vmem:[%s1 + $0xf8] sm:$0xff]
    %v80 = vld [vmem:[%s2] sm:$0x1]
    %v82 = vperm.slane %v80, 0
    %84 = vmatpush.msra.mxu0 %v63
    %85 = vmatpush.msra.mxu0 %v62
    %86 = vmatpush.msra.mxu0 %v61
    %87 = vmatpush.msra.mxu0 %v60
    %88 = vmatpush.msra.mxu0 %v59
    %89 = vmatpush.msra.mxu0 %v58
    %90 = vmatpush.msra.mxu0 %v57
    %91 = vmatpush.msra.mxu0 %v56
    %92 = vmatpush.msra.mxu0 %v55
    %93 = vmatpush.msra.mxu0 %v54
    %94 = vmatpush.msra.mxu0 %v53
    %95 = vmatpush.msra.mxu0 %v52
    %96 = vmatpush.msra.mxu0 %v51
    %97 = vmatpush.msra.mxu0 %v50
    %98 = vmatpush.msra.mxu0 %v49
    %99 = vmatpush.msra.mxu0 %v48
    %100 = vmatmul.f32.gmra.mxu0 %v42
    %v101 = vpop.f32.mrf.mxu0
    %v102 = vadd.f32 %v82, %v101
    %103 = vmatmul.f32.gmra.mxu0 %v44
    %v104 = vpop.f32.mrf.mxu0
    %v105 = vadd.f32 %v82, %v104
    %106 = vmatmul.f32.gmra.mxu0 %v46
    %v107 = vpop.f32.mrf.mxu0
    %v108 = vadd.f32 %v82, %v107
    %109 = vdwg.mxu0
    %110 = vmatpush.msra.mxu0 %v79
    %111 = vmatpush.msra.mxu0 %v78
    %112 = vmatpush.msra.mxu0 %v77
    %113 = vmatpush.msra.mxu0 %v76
    %114 = vmatpush.msra.mxu0 %v75
    %115 = vmatpush.msra.mxu0 %v74
    %116 = vmatpush.msra.mxu0 %v73
    %117 = vmatpush.msra.mxu0 %v72
    %118 = vmatpush.msra.mxu0 %v71
    %119 = vmatpush.msra.mxu0 %v70
    %120 = vmatpush.msra.mxu0 %v69
    %121 = vmatpush.msra.mxu0 %v68
    %122 = vmatpush.msra.mxu0 %v67
    %123 = vmatpush.msra.mxu0 %v66
    %124 = vmatpush.msra.mxu0 %v65
    %125 = vmatpush.msra.mxu0 %v64
    %126 = vmatmul.f32.gmra.mxu0 %v43
    %v127 = vpop.f32.mrf.mxu0
    %v128 = vadd.f32 %v102, %v127
    %129 = vmatmul.f32.gmra.mxu0 %v45
    %v130 = vpop.f32.mrf.mxu0
    %v131 = vadd.f32 %v105, %v130
    %132 = vmatmul.f32.gmra.mxu0 %v47
    %v133 = vpop.f32.mrf.mxu0
    %v134 = vadd.f32 %v108, %v133
    %135 = vdwg.mxu0
    %v136 = vmax.f32 %v128, 0.0
    %v137 = vmax.f32 %v131, 0.0
    %v138 = vmax.f32 %v134, 0.0
    %v139 = vld [vmem:[%s3] sm:$0xff]
    %v140 = vld [vmem:[%s3 + $0x8] sm:$0xff]
    %v141 = vld [vmem:[%s3 + $0x10] sm:$0xff]
    %v142 = vld [vmem:[%s3 + $0x18] sm:$0xff]
    %v143 = vld [vmem:[%s3 + $0x20] sm:$0xff]
    %v144 = vld [vmem:[%s3 + $0x28] sm:$0xff]
    %v145 = vld [vmem:[%s3 + $0x30] sm:$0xff]
    %v146 = vld [vmem:[%s3 + $0x38] sm:$0xff]
    %v147 = vld [vmem:[%s3 + $0x40] sm:$0xff]
    %v148 = vld [vmem:[%s3 + $0x48] sm:$0xff]
    %v149 = vld [vmem:[%s3 + $0x50] sm:$0xff]
    %v150 = vld [vmem:[%s3 + $0x58] sm:$0xff]
    %v151 = vld [vmem:[%s3 + $0x60] sm:$0xff]
    %v152 = vld [vmem:[%s3 + $0x68] sm:$0xff]
    %v153 = vld [vmem:[%s3 + $0x70] sm:$0xff]
    %v154 = vld [vmem:[%s3 + $0x78] sm:$0xff]
    %v155 = vperm.slane %v37, 0
    %156 = vmatpush.msra.mxu0 %v154
    %157 = vmatpush.msra.mxu0 %v153
    %158 = vmatpush.msra.mxu0 %v152
    %159 = vmatpush.msra.mxu0 %v151
    %160 = vmatpush.msra.mxu0 %v150
    %161 = vmatpush.msra.mxu0 %v149
    %162 = vmatpush.msra.mxu0 %v148
    %163 = vmatpush.msra.mxu0 %v147
    %164 = vmatpush.msra.mxu0 %v146
    %165 = vmatpush.msra.mxu0 %v145
    %166 = vmatpush.msra.mxu0 %v144
    %167 = vmatpush.msra.mxu0 %v143
    %168 = vmatpush.msra.mxu0 %v142
    %169 = vmatpush.msra.mxu0 %v141
    %170 = vmatpush.msra.mxu0 %v140
    %171 = vmatpush.msra.mxu0 %v139
    %172 = vmatmul.f32.gmra.mxu0 %v136
    %v173 = vpop.f32.mrf.mxu0
    %v174 = vadd.f32 %v155, %v173
    %175 = vmatmul.f32.gmra.mxu0 %v137
    %v176 = vpop.f32.mrf.mxu0
    %v177 = vadd.f32 %v155, %v176
    %178 = vmatmul.f32.gmra.mxu0 %v138
    %v179 = vpop.f32.mrf.mxu0
    %v180 = vadd.f32 %v155, %v179
    %181 = vdwg.mxu0
    %vm182 = vcmask 64512
    %v183 = vsel %vm182, %v174, -inf
    %184 = vmax.xlane.f32.xlu0 %v183
    %v185 = vpop.xlane.xlu0 %184
    %v186 = vsel %vm182, %v177, -inf
    %187 = vmax.xlane.f32.xlu0 %v186
    %v188 = vpop.xlane.xlu0 %187
    %v189 = vsub.f32 %v174, %v185
    %v190 = vsub.f32 %v177, %v188
    %v191 = vmul.f32 %v189, 1.442695
    %v192 = vpow.pop %v191
    %v193 = vmul.f32 %v190, 1.442695
    %v194 = vpow.pop %v193
    %v195 = vsel %vm182, %v192, 0.0
    %196 = vadd.xlane.f32.xlu0 %v195
    %v197 = vpop.xlane.xlu0 %196
    %v198 = vsel %vm182, %v194, 0.0
    %199 = vadd.xlane.f32.xlu0 %v198
    %v200 = vpop.xlane.xlu0 %199
    %v201 = vlog2.pop %v197
    %v202 = vmul.f32 %v201, 0.6931472
    %v203 = vlog2.pop %v200
    %v204 = vmul.f32 %v203, 0.6931472
    %v205 = vsub.f32 %v189, %v202
    %v206 = vsub.f32 %v190, %v204
    %v207 = vmul.f32 %v36, %v205
    %v208 = vsel %vm182, %v207, 0.0
    %209 = vadd.xlane.f32.xlu0 %v208
    %v210 = vpop.xlane.xlu0 %209
    %v211 = vsub.f32 0.0, %v210
    %v212 = vmul.f32 %v36, %v206
    %v213 = vsel %vm182, %v212, 0.0
    %214 = vadd.xlane.f32.xlu0 %v213
    %v215 = vpop.xlane.xlu0 %214
    %v216 = vsub.f32 0.0, %v215
    %v217 = vrot.slane %v211, 4
    %v218 = vadd.f32 %v211, %v217
    %v219 = vrot.slane %v218, 2
    %v220 = vadd.f32 %v218, %v219
    %v221 = vrot.slane %v220, 1
    %v222 = vadd.f32 %v220, %v221
    %v223 = vrcp.pop 8.0
    %v224 = vmul.f32 8.0, %v223
    %v225 = vsub.f32 1.0, %v224
    %v226 = vmul.f32 %v223, %v225
    %v227 = vadd.f32 %v223, %v226
    %vm228 = vweird.f32 %v223
    %v229 = vsel %vm228, %v223, %v227
    %v230 = vmul.f32 %v222, %v229
    %v231 = vrot.slane %v216, 4
    %v232 = vadd.f32 %v216, %v231
    %v233 = vrot.slane %v232, 2
    %v234 = vadd.f32 %v232, %v233
    %v235 = vrot.slane %v234, 1
    %v236 = vadd.f32 %v234, %v235
    %v237 = vmul.f32 %v236, %v229
    %v238 = vadd.f32 %v230, %v237
    %v239 = vmul.f32 %v238, 0.5
    %v240 = vrcp.pop %v197
    %v241 = vmul.f32 %v197, %v240
    %v242 = vsub.f32 1.0, %v241
    %v243 = vmul.f32 %v240, %v242
    %v244 = vadd.f32 %v240, %v243
    %vm245 = vweird.f32 %v197
    %vm246 = vweird.f32 %v240
    %vm247 = vmor %vm245, %vm246
    %v248 = vsel %vm247, %v240, %v244
    %v249 = vand.u32 2147483647, %v197
    %vm250 = vcmp.eq.f32.partialorder %v249, 8.507059e+37
    %v251 = vand.u32 %v197, 2147483648
    %v252 = vor.u32 1.1754944e-38, %v251
    %v253 = vsel %vm250, %v252, %v248
    %v254 = vmul.f32 %v192, %v253
    %v255 = vsel %vm182, %v254, -inf
    %256 = vmax.xlane.f32.xlu0 %v255
    %v257 = vpop.xlane.xlu0 %256
    %v258 = vrot.slane %v257, 4
    %v259 = vadd.f32 %v257, %v258
    %v260 = vrot.slane %v259, 2
    %v261 = vadd.f32 %v259, %v260
    %v262 = vrot.slane %v261, 1
    %v263 = vadd.f32 %v261, %v262
    %v264 = vmul.f32 %v263, %v229
    %v265 = vstv %s39
    %v266 = vmul.f32 %v265, %v264
    %vm267 = vcmask 60416
    %v268 = vsel %vm267, %v180, -inf
    %269 = vmax.xlane.f32.xlu0 %v268
    %v270 = vpop.xlane.xlu0 %269
    %v271 = vsub.f32 %v180, %v270
    %v272 = vmul.f32 %v271, 1.442695
    %v273 = vpow.pop %v272
    %v274 = vsub.f32 1.0, %v38
    %v275 = vperm.slane %v274, 0
    %v276 = vmul.f32 %v273, %v275
    %v277 = vsel %vm267, %v276, 0.0
    %278 = vadd.xlane.f32.xlu0 %v277
    %v279 = vpop.xlane.xlu0 %278
    %v280 = vmax.f32 %v279, 1e-12
    %v281 = vrcp.pop %v280
    %v282 = vmul.f32 %v280, %v281
    %v283 = vsub.f32 1.0, %v282
    %v284 = vmul.f32 %v281, %v283
    %v285 = vadd.f32 %v281, %v284
    %vm286 = vweird.f32 %v280
    %vm287 = vweird.f32 %v281
    %vm288 = vmor %vm286, %vm287
    %v289 = vsel %vm288, %v281, %v285
    %v290 = vand.u32 2147483647, %v280
    %vm291 = vcmp.eq.f32.partialorder %v290, 8.507059e+37
    %v292 = vand.u32 %v280, 2147483648
    %v293 = vor.u32 1.1754944e-38, %v292
    %v294 = vsel %vm291, %v293, %v289
    %v295 = vmul.f32 %v276, %v294
    %v296 = vsel %vm267, %v295, -inf
    %297 = vmax.xlane.f32.xlu0 %v296
    %v298 = vpop.xlane.xlu0 %297
    %v299 = vlaneseq
    %v300 = vand.u32 %v299, 127
    %vm301 = vcmp.ge.f32.partialorder %v295, %v298
    %v302 = vsel %vm301, %v300, 8
    %v303 = vsel %vm267, %v302, 2147483647
    %v304 = vand.u32 %v303, 65535
    %v305 = vshra.s32 %v303, 16
    %v306 = vcvt.s32.f32 %v304
    %v307 = vcvt.s32.f32 %v305
    %308 = vmin.xlane.f32.xlu0 %v307
    %v309 = vpop.xlane.xlu0 %308
    %vm310 = vcmp.eq.f32.partialorder %v307, %v309
    %v311 = vsel %vm310, %v306, inf
    %312 = vmin.xlane.f32.xlu0 %v311
    %v313 = vpop.xlane.xlu0 %312
    %v314 = vcvt.f32.s32 %v313
    %v315 = vcvt.f32.s32 %v309
    %v316 = vshll.u32 %v315, 16
    %v317 = vadd.s32 %v316, %v314
    %vm318 = vcmp.eq.s32.totalorder %v300, %v317
    %v319 = vsel %vm318, 1, 0
    %v320 = vcvt.s32.f32 %v319
    %vm321 = vcmp.ge.f32.partialorder %v298, %v266
    %v322 = vstv %s41
    %v323 = vsel %vm321, 1.0, %v322
    %vm324 = vcmask 130112
    %v325 = vsel %vm324, %v174, -inf
    %326 = vmax.xlane.f32.xlu0 %v325
    %v327 = vpop.xlane.xlu0 %326
    %v328 = vsel %vm324, %v177, -inf
    %329 = vmax.xlane.f32.xlu0 %v328
    %v330 = vpop.xlane.xlu0 %329
    %v331 = vsub.f32 %v174, %v327
    %v332 = vsub.f32 %v177, %v330
    %v333 = vmul.f32 %v331, 1.442695
    %v334 = vpow.pop %v333
    %v335 = vmul.f32 %v332, 1.442695
    %v336 = vpow.pop %v335
    %339 = vrot.lane.b32.xlu0 %v334, 120
    %v340 = vpop.permute.xlu0 %339
    %341 = vrot.lane.b32.xlu0 %v336, 120
    %v342 = vpop.permute.xlu0 %341
    %v345 = vsel %vm182, %v340, 0.0
    %346 = vadd.xlane.f32.xlu0 %v345
    %v347 = vpop.xlane.xlu0 %346
    %v348 = vsel %vm182, %v342, 0.0
    %349 = vadd.xlane.f32.xlu0 %v348
    %v350 = vpop.xlane.xlu0 %349
    %v351 = vlog2.pop %v347
    %v352 = vmul.f32 %v351, 0.6931472
    %v353 = vlog2.pop %v350
    %v354 = vmul.f32 %v353, 0.6931472
    %v355 = vsub.f32 %v331, %v352
    %v356 = vsub.f32 %v332, %v354
    %358 = vrot.lane.b32.xlu0 %v355, 120
    %v359 = vpop.permute.xlu0 %358
    %v361 = vmul.f32 %v36, %v359
    %v362 = vsel %vm182, %v361, 0.0
    %363 = vadd.xlane.f32.xlu0 %v362
    %v364 = vpop.xlane.xlu0 %363
    %v365 = vsub.f32 0.0, %v364
    %367 = vrot.lane.b32.xlu0 %v356, 120
    %v368 = vpop.permute.xlu0 %367
    %v370 = vmul.f32 %v36, %v368
    %v371 = vsel %vm182, %v370, 0.0
    %372 = vadd.xlane.f32.xlu0 %v371
    %v373 = vpop.xlane.xlu0 %372
    %v374 = vsub.f32 0.0, %v373
    %v375 = vrot.slane %v365, 4
    %v376 = vadd.f32 %v365, %v375
    %v377 = vrot.slane %v376, 2
    %v378 = vadd.f32 %v376, %v377
    %v379 = vrot.slane %v378, 1
    %v380 = vadd.f32 %v378, %v379
    %v381 = vmul.f32 %v380, %v229
    %v382 = vrot.slane %v374, 4
    %v383 = vadd.f32 %v374, %v382
    %v384 = vrot.slane %v383, 2
    %v385 = vadd.f32 %v383, %v384
    %v386 = vrot.slane %v385, 1
    %v387 = vadd.f32 %v385, %v386
    %v388 = vmul.f32 %v387, %v229
    %v389 = vadd.f32 %v381, %v388
    %v390 = vmul.f32 %v389, 0.5
    %vm391 = vcmask 130116
    %v392 = vsel %vm391, %v180, -inf
    %393 = vmax.xlane.f32.xlu0 %v392
    %v394 = vpop.xlane.xlu0 %393
    %v395 = vsub.f32 %v180, %v394
    %v396 = vmul.f32 %v395, 1.442695
    %v397 = vpow.pop %v396
    %399 = vrot.lane.b32.xlu0 %v397, 120
    %v400 = vpop.permute.xlu0 %399
    %vm402 = vcmask 64516
    %v403 = vsel %vm402, %v400, 0.0
    %404 = vadd.xlane.f32.xlu0 %v403
    %v405 = vpop.xlane.xlu0 %404
    %v406 = vlog2.pop %v405
    %v407 = vmul.f32 %v406, 0.6931472
    %v408 = vsub.f32 %v395, %v407
    %v410 = vrot.slane %v408, 4
    %411 = vrot.lane.b32.xlu0 %v410, 120
    %v412 = vpop.permute.xlu0 %411
    %v414 = vmul.f32 %v320, %v412
    %v415 = vsel %vm267, %v414, 0.0
    %416 = vadd.xlane.f32.xlu0 %v415
    %v417 = vpop.xlane.xlu0 %416
    %v418 = vsub.f32 0.0, %v417
    %v419 = vmul.f32 %v418, %v323
    %vm420 = vcmask 1043456
    %v421 = vsel %vm420, %v419, 0.0
    %v422 = vrot.slane %v421, 4
    %v423 = vadd.f32 %v421, %v422
    %v424 = vrot.slane %v423, 2
    %v425 = vadd.f32 %v423, %v424
    %v426 = vrot.slane %v425, 1
    %v427 = vadd.f32 %v425, %v426
    %v428 = vrcp.pop 4.0
    %v429 = vmul.f32 4.0, %v428
    %v430 = vsub.f32 1.0, %v429
    %v431 = vmul.f32 %v428, %v430
    %v432 = vadd.f32 %v428, %v431
    %vm433 = vweird.f32 %v428
    %v434 = vsel %vm433, %v428, %v432
    %v435 = vmul.f32 %v427, %v434
    %v436 = vstv %s40
    %v437 = vmul.f32 %v436, %v435
    %v438 = vadd.f32 %v390, %v437
    %vm439 = vcmp.eq.s32.totalorder %v300, 0
    %v440 = vsel %vm439, %v239, %v438
    %vm441 = vcmask 8192
    %442 = vst.msk [vmem:[%s6] sm:$0x1] %vm441, %v440
    // Predicated region
    $region30: #{_dst_forward_jit.1} parent=1 // pred_check
      _
    $region31: #{_dst_forward_jit.1} parent=1 // pred_check_branch
      %444 = sbr.rel (0) target = $region33
    $region32: #{_dst_forward_jit.1} parent=1 // pred_region
      _
    $region33: #{_dst_forward_jit.1} parent=1 // pred_fallthru
      _
    // Predicated region
    $region34: #{_dst_forward_jit.1} parent=1 // pred_check
      _
    $region35: #{_dst_forward_jit.1} parent=1 // pred_check_branch
      %446 = sbr.rel (0) target = $region37
    $region36: #{_dst_forward_jit.1} parent=1 // pred_region
      _
    $region37: #{_dst_forward_jit.1} parent=1 // pred_fallthru
      _
    %447 = vsyncpa [#allocation3], 1

</llo_original>
